<compile_context>
chip_gen: v6e
topology: v6e:2x2x1
jax: 0.10.0
libtpu: 0.0.40
codegen_flags: <defaults>
</compile_context>

<pallas_src>
import functools
import math

import jax
import jax.numpy as jnp
from jax.experimental import pallas as pl
from jax.experimental.pallas import tpu as pltpu

_LANE = 128


def _cdiv(a, b):
    return -(-a // b)


def _round_up(a, b):
    return _cdiv(a, b) * b


def _sublane_multiple(dtype):
    # f32 -> 8, bf16/f16 -> 16, int8/fp8 -> 32 (packed sublane granularity).
    itemsize = jnp.dtype(dtype).itemsize
    return max(8, 32 // max(itemsize, 1))


def _center_loss_kernel(o_ref, t_ref, out_ref, acc_ref, *, rows_valid,
                        block_rows, blocks_per_p, num_full_blocks, needs_mask):
    """Sum of squared differences over one (block_rows, 128) tile.

    o_ref, t_ref : (block_rows, 128) VMEM tiles of outputs / targets
    out_ref      : (1, 8, 128) per-parallel-slice partial sum (written once)
    acc_ref      : (8, 128) f32 VMEM accumulator (persists across grid steps)
    """
    p = pl.program_id(0)
    s = pl.program_id(1)

    @pl.when(s == 0)
    def _():
        acc_ref[...] = jnp.zeros_like(acc_ref)

    # Promote before subtracting so bf16/fp16 inputs match the f32 reference.
    diff = o_ref[...].astype(jnp.float32) - t_ref[...].astype(jnp.float32)
    sq = diff * diff

    def _accumulate(vals):
        # Fold the block into the (8, 128) accumulator: pure VPU adds, no
        # cross-lane work and no per-step SMEM round trip.
        acc_ref[...] += jnp.sum(vals.reshape(block_rows // 8, 8, _LANE), axis=0)

    if needs_mask:
        nominal = p * blocks_per_p + s          # unclamped block index

        @pl.when(nominal < num_full_blocks)     # fast path: fully valid block
        def _():
            _accumulate(sq)

        @pl.when(nominal >= num_full_blocks)    # overhang / phantom blocks
        def _():
            row0 = nominal * block_rows
            row_ids = row0 + jax.lax.broadcasted_iota(jnp.int32, sq.shape, 0)
            _accumulate(jnp.where(row_ids < rows_valid, sq, 0.0))
    else:
        _accumulate(sq)

    @pl.when(s == pl.num_programs(1) - 1)
    def _():
        out_ref[0] = acc_ref[...]


def _aligned_sq_sum(o2, t2, *, block_rows, num_parallel):
    """Pallas kernel over a (rows, 128) view; returns f32 sum of squared diffs."""
    rows = o2.shape[0]
    sub = _sublane_multiple(o2.dtype)

    # Effective block: multiple of the dtype's packed sublane count, no bigger
    # than needed for small inputs.
    br = min(block_rows, _round_up(rows, sub))
    br = _round_up(br, sub)
    num_blocks = _cdiv(rows, br)

    # Optional split of the row-blocks across a leading "parallel" axis
    # (2 TensorCores on v7x); default 1 on single-core chips.
    P = max(1, min(num_parallel, num_blocks))
    bpp = _cdiv(num_blocks, P)

    has_phantom = (P * bpp != num_blocks)
    overhang = (rows % br != 0)
    needs_mask = overhang or has_phantom
    num_full_blocks = rows // br

    def in_map(p, s):
        blk = p * bpp + s
        if has_phantom:
            # Phantom blocks re-read the last real block; the in-kernel mask
            # zeroes their contribution.
            blk = jnp.minimum(blk, num_blocks - 1)
        return (blk, 0)

    kernel = functools.partial(
        _center_loss_kernel,
        rows_valid=rows,
        block_rows=br,
        blocks_per_p=bpp,
        num_full_blocks=num_full_blocks,
        needs_mask=needs_mask,
    )

    partials = pl.pallas_call(
        kernel,
        out_shape=jax.ShapeDtypeStruct((P, 8, _LANE), jnp.float32),
        grid_spec=pltpu.PrefetchScalarGridSpec(
            num_scalar_prefetch=0,
            grid=(P, bpp),
            in_specs=[
                pl.BlockSpec((br, _LANE), in_map),
                pl.BlockSpec((br, _LANE), in_map),
            ],
            out_specs=pl.BlockSpec((1, 8, _LANE), lambda p, s: (p, 0, 0)),
            scratch_shapes=[pltpu.VMEM((8, _LANE), jnp.float32)],
        ),
        compiler_params=pltpu.CompilerParams(
            # 2 inputs x 2 pipeline buffers x 4 MiB (br=8192) = 16 MiB; 32 MiB
            # gives headroom and is required on v5e (16 MiB scoped default).
            # v7x: block_rows=16384 would need ~48 MiB (fits 64 MiB physical).
            dimension_semantics=("parallel", "arbitrary"),
            vmem_limit_bytes=32 * 1024 * 1024,
        ),
    )(o2, t2)
    # Tiny (P*1024-element) final reduction in plain JAX.
    return jnp.sum(partials, dtype=jnp.float32)


def center_loss(outputs, targets, *, block_rows=8192, num_parallel=1):
    """Pallas implementation of CenterLoss.forward(outputs, targets).

    num_parallel=1 is right for single-TensorCore chips (v5e/v6e); pass 2 on
    v7x so the leading "parallel" grid axis can shard rows over both cores.
    """
    assert outputs.shape == targets.shape
    batch_size = outputs.shape[0]
    total = math.prod(outputs.shape)

    o_flat = outputs.reshape(-1)   # free reshape, no HBM traffic
    t_flat = targets.reshape(-1)

    rem = total % _LANE
    tail = jnp.float32(0.0)
    if rem:
        # <128-element tail folded in with plain JAX (tiny slice).
        to = o_flat[total - rem:].astype(jnp.float32)
        tt = t_flat[total - rem:].astype(jnp.float32)
        tail = jnp.sum((to - tt) ** 2)
        # Kernel runs on the 128-aligned prefix.  NOTE: XLA materializes this
        # prefix slice (one copy of each input); the common lane-aligned case
        # (total % 128 == 0) takes the copy-free path below.
        o_flat = o_flat[: total - rem]
        t_flat = t_flat[: total - rem]

    aligned = total - rem
    if aligned == 0:
        # Degenerate: fewer than 128 elements total.
        return tail / jnp.float32(batch_size)

    rows = aligned // _LANE
    o2 = o_flat.reshape(rows, _LANE)
    t2 = t_flat.reshape(rows, _LANE)

    sq_sum = _aligned_sq_sum(o2, t2, block_rows=block_rows,
                             num_parallel=num_parallel)
    return (sq_sum + tail) / jnp.float32(batch_size)


if __name__ == "__main__":
    key = jax.random.PRNGKey(0)
    k1, k2, k3, k4, k5, k6 = jax.random.split(key, 6)

    # 1) Lane-aligned NCHW input (common case; unmasked fast path).
    o1 = jax.random.normal(k1, (2, 4, 16, 16), dtype=jnp.float32)
    t1 = jax.random.normal(k2, (2, 4, 16, 16), dtype=jnp.float32)
    loss1 = jax.block_until_ready(center_loss(o1, t1))
    ref1 = jnp.sum((o1 - t1) ** 2) / o1.shape[0]
    assert jnp.allclose(loss1, ref1, rtol=1e-5, atol=1e-5), (loss1, ref1)

    # 2) Odd element count (exercises the masked overhang block + JAX tail).
    o2 = jax.random.normal(k3, (2, 3, 7, 5), dtype=jnp.float32)
    t2 = jax.random.normal(k4, (2, 3, 7, 5), dtype=jnp.float32)
    loss2 = jax.block_until_ready(center_loss(o2, t2))
    ref2 = jnp.sum((o2 - t2) ** 2) / o2.shape[0]
    assert jnp.allclose(loss2, ref2, rtol=1e-5, atol=1e-5), (loss2, ref2)

    # 3) bf16 inputs (operands promoted to f32 before subtracting).
    o3 = jax.random.normal(k5, (2, 4, 8, 16), dtype=jnp.bfloat16)
    t3 = jax.random.normal(k6, (2, 4, 8, 16), dtype=jnp.bfloat16)
    loss3 = jax.block_until_ready(center_loss(o3, t3))
    ref3 = jnp.sum((o3.astype(jnp.float32) - t3.astype(jnp.float32)) ** 2) / o3.shape[0]
    assert jnp.allclose(loss3, ref3, rtol=1e-5, atol=1e-5), (loss3, ref3)

    print("KERNEL_OK")
</pallas_src>

<mosaic_0001>
module attributes {stable_mosaic.version = 11 : i64} {
  func.func @_center_loss_kernel(%arg0: i32, %arg1: i32, %arg2: memref<16x128xf32, #tpu.memory_space<vmem>>, %arg3: memref<16x128xf32, #tpu.memory_space<vmem>>, %arg4: memref<1x8x128xf32, #tpu.memory_space<vmem>>, %arg5: memref<8x128xf32, #tpu.memory_space<vmem>>) attributes {dimension_semantics = [#tpu.dimension_semantics<parallel>, #tpu.dimension_semantics<arbitrary>], iteration_bounds = array<i64: 1, 1>, scalar_prefetch = 0 : i64, scratch_operands = 1 : i64, tpu.core_type = #tpu.core_type<tc>, window_params = [{transform_indices = @transform_0, window_bounds = array<i64: 16, 128>}, {transform_indices = @transform_1, window_bounds = array<i64: 16, 128>}, {transform_indices = @transform_2, window_bounds = array<i64: 1, 8, 128>}]} {
    %c0_i32 = arith.constant 0 : i32
    %0 = arith.cmpi eq, %arg1, %c0_i32 : i32
    %1 = arith.extui %0 : i1 to i32
    %c0_i32_0 = arith.constant 0 : i32
    %2 = arith.cmpi ne, %1, %c0_i32_0 : i32
    scf.if %2 {
      %cst_10 = arith.constant 0.000000e+00 : f32
      %15 = vector.broadcast %cst_10 : f32 to vector<8x128xf32>
      %c0_11 = arith.constant 0 : index
      %c0_12 = arith.constant 0 : index
      %16 = vector.load %arg5[%c0_11, %c0_12] : memref<8x128xf32, #tpu.memory_space<vmem>>, vector<8x128xf32>
      tpu.vector_store %arg5[%c0_11, %c0_12], %15 {strides = array<i32>} : memref<8x128xf32, #tpu.memory_space<vmem>>, vector<8x128xf32>,
    } else {
    }
    %c0 = arith.constant 0 : index
    %c0_1 = arith.constant 0 : index
    %3 = vector.load %arg2[%c0, %c0_1] : memref<16x128xf32, #tpu.memory_space<vmem>>, vector<16x128xf32>
    %c0_2 = arith.constant 0 : index
    %c0_3 = arith.constant 0 : index
    %4 = vector.load %arg3[%c0_2, %c0_3] : memref<16x128xf32, #tpu.memory_space<vmem>>, vector<16x128xf32>
    %5 = arith.subf %3, %4 : vector<16x128xf32>
    %6 = arith.mulf %5, %5 : vector<16x128xf32>
    %c0_4 = arith.constant 0 : index
    %c0_5 = arith.constant 0 : index
    %7 = vector.load %arg5[%c0_4, %c0_5] : memref<8x128xf32, #tpu.memory_space<vmem>>, vector<8x128xf32>
    %8 = vector.shape_cast %6 : vector<16x128xf32> to vector<2x8x128xf32>
    %cst = arith.constant dense<0.000000e+00> : vector<8x128xf32>
    %9 = vector.multi_reduction <add>, %8, %cst [0] : vector<2x8x128xf32> to vector<8x128xf32>
    %10 = arith.addf %7, %9 : vector<8x128xf32>
    %c0_6 = arith.constant 0 : index
    %c0_7 = arith.constant 0 : index
    %11 = vector.load %arg5[%c0_6, %c0_7] : memref<8x128xf32, #tpu.memory_space<vmem>>, vector<8x128xf32>
    tpu.vector_store %arg5[%c0_6, %c0_7], %10 {strides = array<i32>} : memref<8x128xf32, #tpu.memory_space<vmem>>, vector<8x128xf32>,
    %c0_i32_8 = arith.constant 0 : i32
    %12 = arith.cmpi eq, %arg1, %c0_i32_8 : i32
    %13 = arith.extui %12 : i1 to i32
    %c0_i32_9 = arith.constant 0 : i32
    %14 = arith.cmpi ne, %13, %c0_i32_9 : i32
    scf.if %14 {
      %c0_10 = arith.constant 0 : index
      %c0_11 = arith.constant 0 : index
      %15 = vector.load %arg5[%c0_10, %c0_11] : memref<8x128xf32, #tpu.memory_space<vmem>>, vector<8x128xf32>
      %c0_12 = arith.constant 0 : index
      %c0_13 = arith.constant 0 : index
      %c0_14 = arith.constant 0 : index
      %16 = vector.load %arg4[%c0_12, %c0_13, %c0_14] : memref<1x8x128xf32, #tpu.memory_space<vmem>>, vector<1x8x128xf32>
      %17 = vector.shape_cast %16 : vector<1x8x128xf32> to vector<8x128xf32>
      %18 = vector.shape_cast %15 : vector<8x128xf32> to vector<1x8x128xf32>
      tpu.vector_store %arg4[%c0_12, %c0_13, %c0_14], %18 {strides = array<i32>} : memref<1x8x128xf32, #tpu.memory_space<vmem>>, vector<1x8x128xf32>,
    } else {
    }
    return
  }
  func.func @transform_0(%arg0: i32, %arg1: i32) -> (i32, i32) {
    %c1_i32 = arith.constant 1 : i32
    %0 = arith.muli %arg0, %c1_i32 : i32
    %1 = arith.addi %0, %arg1 : i32
    %c0_i32 = arith.constant 0 : i32
    %c0_i32_0 = arith.constant 0 : i32
    return %1, %c0_i32 : i32, i32
  }
  func.func @transform_1(%arg0: i32, %arg1: i32) -> (i32, i32) {
    %c1_i32 = arith.constant 1 : i32
    %0 = arith.muli %arg0, %c1_i32 : i32
    %1 = arith.addi %0, %arg1 : i32
    %c0_i32 = arith.constant 0 : i32
    %c0_i32_0 = arith.constant 0 : i32
    return %1, %c0_i32 : i32, i32
  }
  func.func @transform_2(%arg0: i32, %arg1: i32) -> (i32, i32, i32) {
    %c0_i32 = arith.constant 0 : i32
    %c0_i32_0 = arith.constant 0 : i32
    %c0_i32_1 = arith.constant 0 : i32
    return %arg0, %c0_i32, %c0_i32_0 : i32, i32, i32
  }
}

</mosaic_0001>

<llo_original>
// kernel: tpu_custom_call.1
$region0: #{tpu_custom_call.1}
  #allocation0 [shape = 'u32[]', space=smem, size = 0x4, offset = 0x4, fixed_abs, tag = 'smem constant byte address 0x4 - core index']
  #allocation1 [shape = 'u32[144,128]{1,0:T(1,128)}', space=vmem, size = 0x12000, scoped, tag = 'internal scratch']
  #allocation2 [shape = 'f32[8,128]{1,0:T(8,128)}', space=vmem, size = 0x1000, scoped, tag = 'scratch operand']
  %s0 = inlined_call_operand.hbm [shape: f32[16,128], index: 0, kind: input, shape index: {}]
  %s1 = inlined_call_operand.hbm [shape: f32[16,128], index: 1, kind: input, shape index: {}]
  %s2 = inlined_call_operand.hbm [shape: f32[1,8,128], index: 2, kind: output, shape index: {}]
  %s3 = sld [smem:[#allocation0]]
  $region34: #{tpu_custom_call.1} parent=0
    _
  %s5 = ssub.s32 1, %s3
  %s6 = scalar_select 0, %s5, %s3
  $region1: #{tpu_custom_call.1} parent=0
    #allocation3 [shape = 'u8[8192]{0}', space=vmem, size = 0x2000, scoped, tag = 'input window, operand 0, single buffered']
    #allocation4 [shape = 's32[1]{0}', space=sflag, size = 0x4, scoped, tag = 'scoped memory for tpu_custom_call.1']
    #allocation5 [shape = 's32[1]{0}', space=sflag, size = 0x4, scoped, tag = 'scoped memory for tpu_custom_call.1']
    #allocation6 [shape = 'u8[8192]{0}', space=vmem, size = 0x2000, scoped, tag = 'input window, operand 1, single buffered']
    #allocation7 [shape = 's32[1]{0}', space=sflag, size = 0x4, scoped, tag = 'scoped memory for tpu_custom_call.1']
    #allocation8 [shape = 'u8[4096]{0}', space=vmem, size = 0x1000, scoped, tag = 'output window, operand 0, single buffered']
    %7 = vsyncpa [#allocation4], 0
    %8 = vsyncpa [#allocation7], 0
    %9 = vsyncpa [#allocation5], 0
    // Predicated region
    $region2: #{tpu_custom_call.1} parent=1 // pred_check
      _
    $region3: #{tpu_custom_call.1} parent=1 // pred_check_branch
      %11 = sbr.rel (0) target = $region5
    $region4: #{tpu_custom_call.1} parent=1 // pred_region
      %s12 = sadd.s32 0, 0
      %s13 = smul.u32 2, %s12
      %s15 = ssub.s32 256, 256
      %16 = vsyncadd [#allocation4], %s15
      %s17 = smul.addr %s13, 128
      %s18 = scalar_lea.hbm %s0, %s17
      %s19 = sshll.u32 [#allocation3], 4
      %s20 = int_to_ptr.vmem [resolvable:$true] %s19
      %25 = dma.hbm_to_vmem [thread:$0]  %s18, 256, %s20, [#allocation4], 128, 128, 8
    $region5: #{tpu_custom_call.1} parent=1 // pred_fallthru
      _
    // Predicated region
    $region6: #{tpu_custom_call.1} parent=1 // pred_check
      _
    $region7: #{tpu_custom_call.1} parent=1 // pred_check_branch
      %27 = sbr.rel (0) target = $region9
    $region8: #{tpu_custom_call.1} parent=1 // pred_region
      %s28 = sadd.s32 0, 0
      %s29 = smul.u32 2, %s28
      %s31 = ssub.s32 256, 256
      %32 = vsyncadd [#allocation7], %s31
      %s33 = smul.addr %s29, 128
      %s34 = scalar_lea.hbm %s1, %s33
      %s35 = sshll.u32 [#allocation6], 4
      %s36 = int_to_ptr.vmem [resolvable:$true] %s35
      %41 = dma.hbm_to_vmem [thread:$0]  %s34, 256, %s36, [#allocation7], 128, 128, 8
    $region9: #{tpu_custom_call.1} parent=1 // pred_fallthru
      _
    // Predicated region
    $region10: #{tpu_custom_call.1} parent=1 // pred_check
      _
    $region11: #{tpu_custom_call.1} parent=1 // pred_check_branch
      %43 = sbr.rel (0) target = $region13
    $region12: #{tpu_custom_call.1} parent=1 // pred_region
      %44 = dma.done [#allocation4], 256
    $region13: #{tpu_custom_call.1} parent=1 // pred_fallthru
      _
    // Predicated region
    $region14: #{tpu_custom_call.1} parent=1 // pred_check
      _
    $region15: #{tpu_custom_call.1} parent=1 // pred_check_branch
      %46 = sbr.rel (0) target = $region17
    $region16: #{tpu_custom_call.1} parent=1 // pred_region
      %47 = dma.done [#allocation7], 256
    $region17: #{tpu_custom_call.1} parent=1 // pred_fallthru
      _
    %s48 = sadd.s32 0, 0
    %s49 = smul.u32 2, %s48
    %s50 = sadd.s32 0, 0
    %s51 = smul.u32 2, %s50
    %p52 = scmp.eq.s32.totalorder 0, 0
    // Predicated region
    $region18: #{tpu_custom_call.1} parent=1 // pred_check
      %p53 = pneg %p52
    $region19: #{tpu_custom_call.1} parent=1 // pred_check_branch
      %55 = sbr.rel (%p53) target = $region21
    $region20: #{tpu_custom_call.1} parent=1 // pred_region
      %56 = vst [vmem:[#allocation2] sm:$0xff] 0.0
    $region21: #{tpu_custom_call.1} parent=1 // pred_fallthru
      _
    %v57 = vld [vmem:[#allocation3] sm:$0xff]
    %v58 = vld [vmem:[#allocation3 + $0x8] sm:$0xff]
    %v59 = vld [vmem:[#allocation6] sm:$0xff]
    %v60 = vld [vmem:[#allocation6 + $0x8] sm:$0xff]
    %v61 = vsub.f32 %v57, %v59
    %v62 = vsub.f32 %v58, %v60
    %v63 = vmul.f32 %v61, %v61
    %v64 = vmul.f32 %v62, %v62
    %v65 = vld [vmem:[#allocation2] sm:$0xff]
    %v66 = vadd.f32 %v63, %v64
    %v67 = vadd.f32 %v65, %v66
    %68 = vst [vmem:[#allocation2] sm:$0xff] %v67
    // Predicated region
    $region22: #{tpu_custom_call.1} parent=1 // pred_check
      %p69 = pneg %p52
    $region23: #{tpu_custom_call.1} parent=1 // pred_check_branch
      %71 = sbr.rel (%p69) target = $region25
    $region24: #{tpu_custom_call.1} parent=1 // pred_region
      %v72 = vld [vmem:[#allocation2] sm:$0xff]
      %73 = vst [vmem:[#allocation8] sm:$0xff] %v72
    $region25: #{tpu_custom_call.1} parent=1 // pred_fallthru
      _
    // Predicated region
    $region26: #{tpu_custom_call.1} parent=1 // pred_check
      _
    $region27: #{tpu_custom_call.1} parent=1 // pred_check_branch
      %75 = sbr.rel (0) target = $region29
    $region28: #{tpu_custom_call.1} parent=1 // pred_region
      %s77 = ssub.s32 128, 128
      %78 = vsyncadd [#allocation5], %s77
      %s80 = sshll.u32 [#allocation8], 4
      %s81 = int_to_ptr.vmem [resolvable:$true] %s80
      %83 = dma.vmem_to_hbm [thread:$0]  %s81, 128, %s2, [#allocation5]
    $region29: #{tpu_custom_call.1} parent=1 // pred_fallthru
      _
    // Predicated region
    $region30: #{tpu_custom_call.1} parent=1 // pred_check
      _
    $region31: #{tpu_custom_call.1} parent=1 // pred_check_branch
      %85 = sbr.rel (0) target = $region33
    $region32: #{tpu_custom_call.1} parent=1 // pred_region
      %86 = dma.done [#allocation5], 128
    $region33: #{tpu_custom_call.1} parent=1 // pred_fallthru
      _
    %87 = vsyncpa [#allocation4], 1
    %88 = vsyncpa [#allocation7], 1
    %89 = vsyncpa [#allocation5], 1

</llo_original>
